<compile_context>
chip_gen: v6e
topology: v6e:2x2x1
jax: 0.10.0
libtpu: 0.0.40
codegen_flags: <defaults>
</compile_context>

<pallas_src>
import functools

import jax
import jax.numpy as jnp
from jax.experimental import pallas as pl
from jax.experimental.pallas import tpu as pltpu

LANE = 128  # feature dims (hidden / classes) are zero-padded to this for lane-dense stores


def _vmem_capacity_bytes():
    try:
        return int(pltpu.get_tpu_info().vmem_capacity_bytes)
    except Exception:
        return 64 * 1024 * 1024  # conservative fallback (v7x per-TC capacity)


_VMEM_CAP = _vmem_capacity_bytes()
# ~48 MiB on v7x (64 MiB/TC), ~96-100 MiB on v5e/v6e (128 MiB).
VMEM_LIMIT = min(int(0.75 * _VMEM_CAP), 100 * 1024 * 1024)


def _round_up(x, m):
    return ((x + m - 1) // m) * m


def _pad2(x, rows, cols):
    return jnp.pad(x, ((0, rows - x.shape[0]), (0, cols - x.shape[1])))


# ----------------------------------------------------------------------------
# fused kernel (small graphs: everything resident in VMEM, one launch)
# ----------------------------------------------------------------------------
def _fused_gcn_kernel(a_ref, x_ref, w1_ref, b1_ref, w2_ref, b2_ref,
                      rin_ref, rout_ref, o_ref):
    """Whole 2-layer GCN in one grid step.

    A is the raw 0/1 adjacency (exact in bf16); the 'both' normalization is applied
    factored: scale P rows by r_out before the A matmul, scale the product rows by
    r_in after.  All matmuls accumulate in f32 on the MXU.
    """
    a = a_ref[...]
    rin = rin_ref[...]
    rout = rout_ref[...]
    # layer 1: P1 = (X @ W1) * r_out ; H = relu(r_in * (A @ P1) + b1)
    xw = jnp.dot(x_ref[...], w1_ref[...], preferred_element_type=jnp.float32)
    p1 = (xw * rout).astype(jnp.bfloat16)
    h = jnp.maximum(
        jnp.dot(a, p1, preferred_element_type=jnp.float32) * rin + b1_ref[...], 0.0)
    # layer 2: P2 = (H @ W2) * r_out ; out = r_in * (A @ P2) + b2
    hw = jnp.dot(h.astype(jnp.bfloat16), w2_ref[...],
                 preferred_element_type=jnp.float32)
    p2 = (hw * rout).astype(jnp.bfloat16)
    o_ref[...] = (
        jnp.dot(a, p2, preferred_element_type=jnp.float32) * rin + b2_ref[...]
    ).astype(o_ref.dtype)


def _fused_forward(a_bf, x_bf, w1_p, b1_p, w2_p, b2_p, r_in, r_out):
    np_ = a_bf.shape[0]
    f = x_bf.shape[1]

    def spec2(shape):
        return pl.BlockSpec(shape, lambda i: (0, 0))

    return pl.pallas_call(
        _fused_gcn_kernel,
        out_shape=jax.ShapeDtypeStruct((np_, LANE), jnp.float32),
        grid_spec=pltpu.PrefetchScalarGridSpec(
            num_scalar_prefetch=0,
            grid=(1,),
            in_specs=[
                spec2((np_, np_)),    # A (0/1, bf16)
                spec2((np_, f)),      # X
                spec2((f, LANE)),     # W1
                spec2((1, LANE)),     # b1
                spec2((LANE, LANE)),  # W2
                spec2((1, LANE)),     # b2
                spec2((np_, 1)),      # r_in  = D_in^{-1/2}
                spec2((np_, 1)),      # r_out = D_out^{-1/2}
            ],
            out_specs=spec2((np_, LANE)),
        ),
        compiler_params=pltpu.CompilerParams(
            dimension_semantics=("arbitrary",),
            vmem_limit_bytes=VMEM_LIMIT,
        ),
    )(a_bf, x_bf, w1_p, b1_p, w2_p, b2_p, r_in, r_out)


# ----------------------------------------------------------------------------
# tiled kernels (large graphs)
# ----------------------------------------------------------------------------
def _project_kernel(x_ref, w_ref, rout_ref, o_ref):
    """One row-block of P = (X @ W) * r_out, bf16 out (feeds the aggregate MXU)."""
    xw = jnp.dot(x_ref[...], w_ref[...], preferred_element_type=jnp.float32)
    o_ref[...] = (xw * rout_ref[...]).astype(o_ref.dtype)


def _project(x_bf, w_p, r_out, tile):
    np_, f = x_bf.shape
    h = w_p.shape[1]
    return pl.pallas_call(
        _project_kernel,
        out_shape=jax.ShapeDtypeStruct((np_, h), jnp.bfloat16),
        grid_spec=pltpu.PrefetchScalarGridSpec(
            num_scalar_prefetch=0,
            grid=(np_ // tile,),
            in_specs=[
                pl.BlockSpec((tile, f), lambda i: (i, 0)),
                pl.BlockSpec((f, h), lambda i: (0, 0)),
                pl.BlockSpec((tile, 1), lambda i: (i, 0)),
            ],
            out_specs=pl.BlockSpec((tile, h), lambda i: (i, 0)),
        ),
        compiler_params=pltpu.CompilerParams(
            dimension_semantics=("parallel",),
            vmem_limit_bytes=VMEM_LIMIT,
        ),
    )(x_bf, w_p, r_out)


def _aggregate_kernel(a_ref, p_ref, b_ref, rin_ref, o_ref, acc_ref, *, relu, tk):
    """Tiled A @ P with K-reduction over source-node blocks.

    grid = (dst_row_blocks, src_col_blocks).  P is a full-extent VMEM-resident block
    (fetched once); the current K slab is sliced in-kernel.  Bias, row-scaling
    (D_in^{-1/2}) and optional ReLU only at finalize.
    """
    k = pl.program_id(1)

    @pl.when(k == 0)
    def _():
        acc_ref[...] = jnp.zeros_like(acc_ref)

    off = pl.multiple_of(k * tk, tk)
    acc_ref[...] += jnp.dot(a_ref[...], p_ref[pl.ds(off, tk), :],
                            preferred_element_type=jnp.float32)

    @pl.when(k == pl.num_programs(1) - 1)
    def _():
        out = acc_ref[...] * rin_ref[...] + b_ref[...]
        if relu:
            out = jnp.maximum(out, 0.0)
        o_ref[...] = out.astype(o_ref.dtype)


def _aggregate(a_bf, p, bias, r_in, tm, tk, *, relu, out_dtype):
    np_ = a_bf.shape[0]
    h = p.shape[1]
    kernel = functools.partial(_aggregate_kernel, relu=relu, tk=tk)
    return pl.pallas_call(
        kernel,
        out_shape=jax.ShapeDtypeStruct((np_, h), out_dtype),
        grid_spec=pltpu.PrefetchScalarGridSpec(
            num_scalar_prefetch=0,
            grid=(np_ // tm, np_ // tk),
            in_specs=[
                pl.BlockSpec((tm, tk), lambda i, k: (i, k)),   # A tile
                pl.BlockSpec((np_, h), lambda i, k: (0, 0)),   # P pinned in VMEM
                pl.BlockSpec((1, h), lambda i, k: (0, 0)),     # bias
                pl.BlockSpec((tm, 1), lambda i, k: (i, 0)),    # r_in rows
            ],
            out_specs=pl.BlockSpec((tm, h), lambda i, k: (i, 0)),
            scratch_shapes=[pltpu.VMEM((tm, h), jnp.float32)],
        ),
        compiler_params=pltpu.CompilerParams(
            dimension_semantics=("parallel", "arbitrary"),
            vmem_limit_bytes=VMEM_LIMIT,
        ),
    )(a_bf, p, bias, r_in)


# ----------------------------------------------------------------------------
# planning / preprocessing / forward
# ----------------------------------------------------------------------------
def _fused_fits(np_, f_in):
    """Rough double-buffered VMEM footprint of the fused call vs budget."""
    a_b = np_ * np_ * 2
    x_b = np_ * f_in * 2
    o_b = np_ * LANE * 4
    tmp = 6 * np_ * LANE * 4 + 4 * LANE * LANE
    est = 2 * (a_b + x_b + o_b) + tmp
    return est <= int(0.6 * VMEM_LIMIT)


def _tiled_tiles(np_):
    """Decoupled (TM dst-rows, TK src-cols) tiles; TM gives >=2 row blocks when possible."""
    for tk in (1024, 512, 256, 128):
        if np_ % tk == 0:
            break
    tm = max(tk // 2, 128)
    return tm, tk


def _plan(n, f_in, force_tiled):
    """Padded node count; fused path pads to 128 lanes, tiled path to a K-tile multiple."""
    np_fused = _round_up(max(n, 8), LANE)
    if (not force_tiled) and _fused_fits(np_fused, f_in):
        return np_fused
    if n >= 2048:
        gran = 1024
    elif n >= 512:
        gran = 256
    else:
        gran = 128
    return _round_up(n, gran)


def prepare_graph(adj, np_):
    """One-time per-graph preprocessing (hoisted out of the per-forward path).

    adj[dst, src] in {0,1}.  Returns the zero-padded 0/1 adjacency in bf16 (exact)
    plus the factored 'both' normalization vectors:
      r_in  = 1/sqrt(clamp(in_deg, 1))   (scales aggregate rows)
      r_out = 1/sqrt(clamp(out_deg, 1))  (scales projected-feature rows)
    Padded rows/cols of A are zero, so padded nodes never contaminate real outputs.
    """
    n = adj.shape[0]
    a = jnp.pad(adj.astype(jnp.float32), ((0, np_ - n), (0, np_ - n)))
    in_deg = jnp.clip(jnp.sum(a, axis=1), 1.0, None)
    out_deg = jnp.clip(jnp.sum(a, axis=0), 1.0, None)
    r_in = (1.0 / jnp.sqrt(in_deg))[:, None].astype(jnp.float32)
    r_out = (1.0 / jnp.sqrt(out_deg))[:, None].astype(jnp.float32)
    # TODO(synk): fp8(e4m3) A on v7x / int8 A on v5e-v6e would halve the A HBM stream
    # for large graphs (0/1 is exactly representable); bf16 kept for portability here.
    return a.astype(jnp.bfloat16), r_in, r_out


def _gcn_forward(a_bf, r_in, r_out, x, w1, b1, w2, b2, *, force_tiled=False):
    """Padded two-layer GCN forward.  Returns (Np, 128) f32; caller slices [:n, :c]."""
    np_ = a_bf.shape[0]
    f_in = x.shape[1]

    # bf16 MXU inputs (f32 accumulation inside the kernels); hidden/class dims padded
    # to 128 lanes so every intermediate slab and output store is lane-dense.
    x_p = _pad2(x, np_, f_in).astype(jnp.bfloat16)
    w1_p = _pad2(w1, f_in, LANE).astype(jnp.bfloat16)
    w2_p = _pad2(w2, LANE, LANE).astype(jnp.bfloat16)
    b1_p = _pad2(b1, 1, LANE).astype(jnp.float32)
    b2_p = _pad2(b2, 1, LANE).astype(jnp.float32)

    if (not force_tiled) and _fused_fits(np_, f_in):
        # Small graphs: one launch, all operands VMEM-resident, no HBM round trips.
        return _fused_forward(a_bf, x_p, w1_p, b1_p, w2_p, b2_p, r_in, r_out)

    # Large graphs: project once per layer, then stream A tiles over the VMEM-resident
    # projected features with an f32 accumulator.
    # NOTE: padded rows of h hold relu(b1); this is harmless only because the padded
    # columns of A are zero -- keep A zero-padded.
    tm, tk = _tiled_tiles(np_)
    p1 = _project(x_p, w1_p, r_out, tk)
    h = _aggregate(a_bf, p1, b1_p, r_in, tm, tk, relu=True, out_dtype=jnp.bfloat16)
    p2 = _project(h, w2_p, r_out, tk)
    return _aggregate(a_bf, p2, b2_p, r_in, tm, tk, relu=False, out_dtype=jnp.float32)


_gcn_forward_jit = jax.jit(_gcn_forward, static_argnames=("force_tiled",))


def run_gcn(adj, x, w1, b1, w2, b2, *, force_tiled=False):
    n, f_in = x.shape
    c = w2.shape[1]
    assert w1.shape[1] <= LANE and w2.shape[1] <= LANE, "hidden/classes must be <= 128"
    np_ = _plan(n, f_in, force_tiled)
    a_bf, r_in, r_out = prepare_graph(adj, np_)   # one-time graph prep, outside the jit
    out = _gcn_forward_jit(a_bf, r_in, r_out, x, w1, b1, w2, b2,
                           force_tiled=force_tiled)
    return out[:n, :c]


# ----------------------------------------------------------------------------
# inputs + reference
# ----------------------------------------------------------------------------
def random_adjacency(key, n_nodes, edge_prob=0.15):
    """Random directed 0/1 adjacency; a[dst, src] = 1 if edge src -> dst."""
    return jax.random.bernoulli(key, edge_prob, (n_nodes, n_nodes)).astype(jnp.float32)


def glorot(key, shape):
    fan_in, fan_out = shape
    limit = jnp.sqrt(6.0 / (fan_in + fan_out))
    return jax.random.uniform(key, shape, jnp.float32, -limit, limit)


def gcn_reference(adj, x, w1, b1, w2, b2):
    """Pure-JAX DGL GraphConv(norm='both') x2 + ReLU (f32 aggregation, bf16 casts on
    the same tensors the kernel casts)."""
    a = adj.astype(jnp.float32)
    r_in = 1.0 / jnp.sqrt(jnp.clip(jnp.sum(a, axis=1), 1.0, None))
    r_out = 1.0 / jnp.sqrt(jnp.clip(jnp.sum(a, axis=0), 1.0, None))
    a_norm = a * r_in[:, None] * r_out[None, :]
    bf = lambda v: v.astype(jnp.bfloat16).astype(jnp.float32)
    h = jnp.maximum(a_norm @ (bf(x) @ bf(w1)) + b1, 0.0)
    return a_norm @ (bf(h) @ bf(w2)) + b2


if __name__ == "__main__":
    N_NODES = 64
    IN_FEATS = 16
    HIDDEN = 32
    NUM_CLASSES = 8

    root = jax.random.PRNGKey(0)
    k_adj, k_x, k_w1, k_w2, k_b1, k_b2, k_adj2, k_x2 = jax.random.split(root, 8)

    adj = random_adjacency(k_adj, N_NODES)
    x = jax.random.normal(k_x, (N_NODES, IN_FEATS), jnp.float32)

    # GraphConv params: weight (in, out); biases kept 2D for lane-dense broadcast.
    w1 = glorot(k_w1, (IN_FEATS, HIDDEN))
    b1 = 0.1 * jax.random.normal(k_b1, (1, HIDDEN), jnp.float32)
    w2 = glorot(k_w2, (HIDDEN, NUM_CLASSES))
    b2 = 0.1 * jax.random.normal(k_b2, (1, NUM_CLASSES), jnp.float32)

    # --- fused fast path (default at this size) ---
    out = jax.block_until_ready(run_gcn(adj, x, w1, b1, w2, b2))
    ref = gcn_reference(adj, x, w1, b1, w2, b2)
    assert out.shape == (N_NODES, NUM_CLASSES)
    assert jnp.allclose(out, ref, atol=2.5e-2, rtol=2.5e-2), (
        float(jnp.max(jnp.abs(out - ref))))

    # --- tiled path (forced) on a slightly larger graph to exercise the accumulator ---
    N2 = 320
    adj2 = random_adjacency(k_adj2, N2)
    x2 = jax.random.normal(k_x2, (N2, IN_FEATS), jnp.float32)
    out2 = jax.block_until_ready(run_gcn(adj2, x2, w1, b1, w2, b2, force_tiled=True))
    ref2 = gcn_reference(adj2, x2, w1, b1, w2, b2)
    assert out2.shape == (N2, NUM_CLASSES)
    assert jnp.allclose(out2, ref2, atol=2.5e-2, rtol=2.5e-2), (
        float(jnp.max(jnp.abs(out2 - ref2))))

    print("KERNEL_OK")
</pallas_src>

<mosaic_0001>
module attributes {stable_mosaic.version = 11 : i64} {
  func.func @_fused_gcn_kernel(%arg0: i32, %arg1: memref<128x128xbf16, #tpu.memory_space<vmem>>, %arg2: memref<128x16xbf16, #tpu.memory_space<vmem>>, %arg3: memref<16x128xbf16, #tpu.memory_space<vmem>>, %arg4: memref<1x128xf32, #tpu.memory_space<vmem>>, %arg5: memref<128x128xbf16, #tpu.memory_space<vmem>>, %arg6: memref<1x128xf32, #tpu.memory_space<vmem>>, %arg7: memref<128x1xf32, #tpu.memory_space<vmem>>, %arg8: memref<128x1xf32, #tpu.memory_space<vmem>>, %arg9: memref<128x128xf32, #tpu.memory_space<vmem>>) attributes {dimension_semantics = [#tpu.dimension_semantics<arbitrary>], iteration_bounds = array<i64: 1>, scalar_prefetch = 0 : i64, scratch_operands = 0 : i64, tpu.core_type = #tpu.core_type<tc>, window_params = [{pipeline_mode = #tpu.pipeline_mode<synchronous>, transform_indices = @transform_0, window_bounds = array<i64: 128, 128>}, {pipeline_mode = #tpu.pipeline_mode<synchronous>, transform_indices = @transform_1, window_bounds = array<i64: 128, 16>}, {pipeline_mode = #tpu.pipeline_mode<synchronous>, transform_indices = @transform_2, window_bounds = array<i64: 16, 128>}, {pipeline_mode = #tpu.pipeline_mode<synchronous>, transform_indices = @transform_3, window_bounds = array<i64: 1, 128>}, {pipeline_mode = #tpu.pipeline_mode<synchronous>, transform_indices = @transform_4, window_bounds = array<i64: 128, 128>}, {pipeline_mode = #tpu.pipeline_mode<synchronous>, transform_indices = @transform_5, window_bounds = array<i64: 1, 128>}, {pipeline_mode = #tpu.pipeline_mode<synchronous>, transform_indices = @transform_6, window_bounds = array<i64: 128, 1>}, {pipeline_mode = #tpu.pipeline_mode<synchronous>, transform_indices = @transform_7, window_bounds = array<i64: 128, 1>}, {pipeline_mode = #tpu.pipeline_mode<synchronous>, transform_indices = @transform_8, window_bounds = array<i64: 128, 128>}]} {
    %c0 = arith.constant 0 : index
    %c0_0 = arith.constant 0 : index
    %0 = vector.load %arg1[%c0, %c0_0] : memref<128x128xbf16, #tpu.memory_space<vmem>>, vector<128x128xbf16>
    %c0_1 = arith.constant 0 : index
    %c0_2 = arith.constant 0 : index
    %1 = vector.load %arg7[%c0_1, %c0_2] : memref<128x1xf32, #tpu.memory_space<vmem>>, vector<128x1xf32>
    %c0_3 = arith.constant 0 : index
    %c0_4 = arith.constant 0 : index
    %2 = vector.load %arg8[%c0_3, %c0_4] : memref<128x1xf32, #tpu.memory_space<vmem>>, vector<128x1xf32>
    %c0_5 = arith.constant 0 : index
    %c0_6 = arith.constant 0 : index
    %3 = vector.load %arg2[%c0_5, %c0_6] : memref<128x16xbf16, #tpu.memory_space<vmem>>, vector<128x16xbf16>
    %c0_7 = arith.constant 0 : index
    %c0_8 = arith.constant 0 : index
    %4 = vector.load %arg3[%c0_7, %c0_8] : memref<16x128xbf16, #tpu.memory_space<vmem>>, vector<16x128xbf16>
    %cst = arith.constant dense<0.000000e+00> : vector<128x128xf32>
    %5 = tpu.matmul %3, %4, %cst {dimension_numbers = #tpu.dot_dimension_numbers<[1], [0], [0], [1], [0, 0, 1, 1], [], []>} : vector<128x16xbf16>, vector<16x128xbf16>, vector<128x128xf32> -> vector<128x128xf32>
    %6 = vector.broadcast %2 : vector<128x1xf32> to vector<128x128xf32>
    %7 = arith.mulf %5, %6 : vector<128x128xf32>
    %8 = arith.truncf %7 : vector<128x128xf32> to vector<128x128xbf16>
    %cst_9 = arith.constant dense<0.000000e+00> : vector<128x128xf32>
    %9 = tpu.matmul %0, %8, %cst_9 {dimension_numbers = #tpu.dot_dimension_numbers<[1], [0], [0], [1], [0, 0, 1, 1], [], []>} : vector<128x128xbf16>, vector<128x128xbf16>, vector<128x128xf32> -> vector<128x128xf32>
    %10 = vector.broadcast %1 : vector<128x1xf32> to vector<128x128xf32>
    %11 = arith.mulf %9, %10 : vector<128x128xf32>
    %c0_10 = arith.constant 0 : index
    %c0_11 = arith.constant 0 : index
    %12 = vector.load %arg4[%c0_10, %c0_11] : memref<1x128xf32, #tpu.memory_space<vmem>>, vector<1x128xf32>
    %13 = vector.broadcast %12 : vector<1x128xf32> to vector<128x128xf32>
    %14 = arith.addf %11, %13 : vector<128x128xf32>
    %cst_12 = arith.constant 0.000000e+00 : f32
    %15 = vector.broadcast %cst_12 : f32 to vector<128x128xf32>
    %16 = arith.maximumf %14, %15 : vector<128x128xf32>
    %17 = arith.truncf %16 : vector<128x128xf32> to vector<128x128xbf16>
    %c0_13 = arith.constant 0 : index
    %c0_14 = arith.constant 0 : index
    %18 = vector.load %arg5[%c0_13, %c0_14] : memref<128x128xbf16, #tpu.memory_space<vmem>>, vector<128x128xbf16>
    %cst_15 = arith.constant dense<0.000000e+00> : vector<128x128xf32>
    %19 = tpu.matmul %17, %18, %cst_15 {dimension_numbers = #tpu.dot_dimension_numbers<[1], [0], [0], [1], [0, 0, 1, 1], [], []>} : vector<128x128xbf16>, vector<128x128xbf16>, vector<128x128xf32> -> vector<128x128xf32>
    %20 = vector.broadcast %2 : vector<128x1xf32> to vector<128x128xf32>
    %21 = arith.mulf %19, %20 : vector<128x128xf32>
    %22 = arith.truncf %21 : vector<128x128xf32> to vector<128x128xbf16>
    %cst_16 = arith.constant dense<0.000000e+00> : vector<128x128xf32>
    %23 = tpu.matmul %0, %22, %cst_16 {dimension_numbers = #tpu.dot_dimension_numbers<[1], [0], [0], [1], [0, 0, 1, 1], [], []>} : vector<128x128xbf16>, vector<128x128xbf16>, vector<128x128xf32> -> vector<128x128xf32>
    %24 = vector.broadcast %1 : vector<128x1xf32> to vector<128x128xf32>
    %25 = arith.mulf %23, %24 : vector<128x128xf32>
    %c0_17 = arith.constant 0 : index
    %c0_18 = arith.constant 0 : index
    %26 = vector.load %arg6[%c0_17, %c0_18] : memref<1x128xf32, #tpu.memory_space<vmem>>, vector<1x128xf32>
    %27 = vector.broadcast %26 : vector<1x128xf32> to vector<128x128xf32>
    %28 = arith.addf %25, %27 : vector<128x128xf32>
    %c0_19 = arith.constant 0 : index
    %c0_20 = arith.constant 0 : index
    %29 = vector.load %arg9[%c0_19, %c0_20] : memref<128x128xf32, #tpu.memory_space<vmem>>, vector<128x128xf32>
    tpu.vector_store %arg9[%c0_19, %c0_20], %28 {strides = array<i32>} : memref<128x128xf32, #tpu.memory_space<vmem>>, vector<128x128xf32>,
    return
  }
  func.func @transform_0(%arg0: i32) -> (i32, i32) {
    %c0_i32 = arith.constant 0 : i32
    %c0_i32_0 = arith.constant 0 : i32
    %c0_i32_1 = arith.constant 0 : i32
    return %c0_i32, %c0_i32_0 : i32, i32
  }
  func.func @transform_1(%arg0: i32) -> (i32, i32) {
    %c0_i32 = arith.constant 0 : i32
    %c0_i32_0 = arith.constant 0 : i32
    %c0_i32_1 = arith.constant 0 : i32
    return %c0_i32, %c0_i32_0 : i32, i32
  }
  func.func @transform_2(%arg0: i32) -> (i32, i32) {
    %c0_i32 = arith.constant 0 : i32
    %c0_i32_0 = arith.constant 0 : i32
    %c0_i32_1 = arith.constant 0 : i32
    return %c0_i32, %c0_i32_0 : i32, i32
  }
  func.func @transform_3(%arg0: i32) -> (i32, i32) {
    %c0_i32 = arith.constant 0 : i32
    %c0_i32_0 = arith.constant 0 : i32
    %c0_i32_1 = arith.constant 0 : i32
    return %c0_i32, %c0_i32_0 : i32, i32
  }
  func.func @transform_4(%arg0: i32) -> (i32, i32) {
    %c0_i32 = arith.constant 0 : i32
    %c0_i32_0 = arith.constant 0 : i32
    %c0_i32_1 = arith.constant 0 : i32
    return %c0_i32, %c0_i32_0 : i32, i32
  }
  func.func @transform_5(%arg0: i32) -> (i32, i32) {
    %c0_i32 = arith.constant 0 : i32
    %c0_i32_0 = arith.constant 0 : i32
    %c0_i32_1 = arith.constant 0 : i32
    return %c0_i32, %c0_i32_0 : i32, i32
  }
  func.func @transform_6(%arg0: i32) -> (i32, i32) {
    %c0_i32 = arith.constant 0 : i32
    %c0_i32_0 = arith.constant 0 : i32
    %c0_i32_1 = arith.constant 0 : i32
    return %c0_i32, %c0_i32_0 : i32, i32
  }
  func.func @transform_7(%arg0: i32) -> (i32, i32) {
    %c0_i32 = arith.constant 0 : i32
    %c0_i32_0 = arith.constant 0 : i32
    %c0_i32_1 = arith.constant 0 : i32
    return %c0_i32, %c0_i32_0 : i32, i32
  }
  func.func @transform_8(%arg0: i32) -> (i32, i32) {
    %c0_i32 = arith.constant 0 : i32
    %c0_i32_0 = arith.constant 0 : i32
    %c0_i32_1 = arith.constant 0 : i32
    return %c0_i32, %c0_i32_0 : i32, i32
  }
}

</mosaic_0001>

<llo_original>
// kernel: _gcn_forward.1
$region0: #{_gcn_forward.1}
  #allocation0 [shape = 'u32[]', space=smem, size = 0x4, offset = 0x4, fixed_abs, tag = 'smem constant byte address 0x4 - core index']
  #allocation1 [shape = 'u32[144,128]{1,0:T(1,128)}', space=vmem, size = 0x12000, scoped, tag = 'internal scratch']
  %s0 = inlined_call_operand.vmem [shape: bf16[128,128], index: 0, kind: input, shape index: {}]
  %s1 = inlined_call_operand.vmem [shape: bf16[128,16], index: 1, kind: input, shape index: {}]
  %s2 = inlined_call_operand.vmem [shape: bf16[16,128], index: 2, kind: input, shape index: {}]
  %s3 = inlined_call_operand.vmem [shape: f32[1,128], index: 3, kind: input, shape index: {}]
  %s4 = inlined_call_operand.vmem [shape: bf16[128,128], index: 4, kind: input, shape index: {}]
  %s5 = inlined_call_operand.vmem [shape: f32[1,128], index: 5, kind: input, shape index: {}]
  %s6 = inlined_call_operand.vmem [shape: f32[128,1], index: 6, kind: input, shape index: {}]
  %s7 = inlined_call_operand.vmem [shape: f32[128,1], index: 7, kind: input, shape index: {}]
  %s8 = inlined_call_operand.hbm [shape: f32[128,128], index: 8, kind: output, shape index: {}]
  %s9 = sld [smem:[#allocation0]]
  $region42: #{_gcn_forward.1} parent=0
    _
  %s11 = ssub.s32 1, %s9
  %s12 = scalar_select 0, %s11, %s9
  $region1: #{_gcn_forward.1} parent=0
    #allocation2 [shape = 'u8[65536]{0}', space=vmem, size = 0x10000, scoped, tag = 'output window, operand 0, single buffered']
    #allocation3 [shape = 's32[1]{0}', space=sflag, size = 0x4, scoped, tag = 'scoped memory for _gcn_forward.1']
    %13 = vsyncpa [#allocation3], 0
    // Predicated region
    $region2: #{_gcn_forward.1} parent=1 // pred_check
      _
    $region3: #{_gcn_forward.1} parent=1 // pred_check_branch
      %15 = sbr.rel (0) target = $region5
    $region4: #{_gcn_forward.1} parent=1 // pred_region
      _
    $region5: #{_gcn_forward.1} parent=1 // pred_fallthru
      _
    // Predicated region
    $region6: #{_gcn_forward.1} parent=1 // pred_check
      _
    $region7: #{_gcn_forward.1} parent=1 // pred_check_branch
      %17 = sbr.rel (0) target = $region9
    $region8: #{_gcn_forward.1} parent=1 // pred_region
      _
    $region9: #{_gcn_forward.1} parent=1 // pred_fallthru
      _
    // Predicated region
    $region10: #{_gcn_forward.1} parent=1 // pred_check
      _
    $region11: #{_gcn_forward.1} parent=1 // pred_check_branch
      %19 = sbr.rel (0) target = $region13
    $region12: #{_gcn_forward.1} parent=1 // pred_region
      _
    $region13: #{_gcn_forward.1} parent=1 // pred_fallthru
      _
    // Predicated region
    $region14: #{_gcn_forward.1} parent=1 // pred_check
      _
    $region15: #{_gcn_forward.1} parent=1 // pred_check_branch
      %21 = sbr.rel (0) target = $region17
    $region16: #{_gcn_forward.1} parent=1 // pred_region
      _
    $region17: #{_gcn_forward.1} parent=1 // pred_fallthru
      _
    // Predicated region
    $region18: #{_gcn_forward.1} parent=1 // pred_check
      _
    $region19: #{_gcn_forward.1} parent=1 // pred_check_branch
      %23 = sbr.rel (0) target = $region21
    $region20: #{_gcn_forward.1} parent=1 // pred_region
      _
    $region21: #{_gcn_forward.1} parent=1 // pred_fallthru
      _
    // Predicated region
    $region22: #{_gcn_forward.1} parent=1 // pred_check
      _
    $region23: #{_gcn_forward.1} parent=1 // pred_check_branch
      %25 = sbr.rel (0) target = $region25
    $region24: #{_gcn_forward.1} parent=1 // pred_region
      _
    $region25: #{_gcn_forward.1} parent=1 // pred_fallthru
      _
    // Predicated region
    $region26: #{_gcn_forward.1} parent=1 // pred_check
      _
    $region27: #{_gcn_forward.1} parent=1 // pred_check_branch
      %27 = sbr.rel (0) target = $region29
    $region28: #{_gcn_forward.1} parent=1 // pred_region
      _
    $region29: #{_gcn_forward.1} parent=1 // pred_fallthru
      _
    // Predicated region
    $region30: #{_gcn_forward.1} parent=1 // pred_check
      _
    $region31: #{_gcn_forward.1} parent=1 // pred_check_branch
      %29 = sbr.rel (0) target = $region33
    $region32: #{_gcn_forward.1} parent=1 // pred_region
      _
    $region33: #{_gcn_forward.1} parent=1 // pred_fallthru
      _
    %v31 = vld [vmem:[%s0] sm:$0xf]
    %v32 = vld [vmem:[%s0 + $0x4] sm:$0xf]
    %v33 = vld [vmem:[%s0 + $0x8] sm:$0xf]
    %v34 = vld [vmem:[%s0 + $0xc] sm:$0xf]
    %v35 = vld [vmem:[%s0 + $0x10] sm:$0xf]
    %v36 = vld [vmem:[%s0 + $0x14] sm:$0xf]
    %v37 = vld [vmem:[%s0 + $0x18] sm:$0xf]
    %v38 = vld [vmem:[%s0 + $0x1c] sm:$0xf]
    %v39 = vld [vmem:[%s0 + $0x20] sm:$0xf]
    %v40 = vld [vmem:[%s0 + $0x24] sm:$0xf]
    %v41 = vld [vmem:[%s0 + $0x28] sm:$0xf]
    %v42 = vld [vmem:[%s0 + $0x2c] sm:$0xf]
    %v43 = vld [vmem:[%s0 + $0x30] sm:$0xf]
    %v44 = vld [vmem:[%s0 + $0x34] sm:$0xf]
    %v45 = vld [vmem:[%s0 + $0x38] sm:$0xf]
    %v46 = vld [vmem:[%s0 + $0x3c] sm:$0xf]
    %v47 = vld [vmem:[%s6] sm:$0xff]
    %v48 = vld [vmem:[%s6 + $0x8] sm:$0xff]
    %v49 = vld [vmem:[%s6 + $0x10] sm:$0xff]
    %v50 = vld [vmem:[%s6 + $0x18] sm:$0xff]
    %v51 = vld [vmem:[%s6 + $0x20] sm:$0xff]
    %v52 = vld [vmem:[%s6 + $0x28] sm:$0xff]
    %v53 = vld [vmem:[%s6 + $0x30] sm:$0xff]
    %v54 = vld [vmem:[%s6 + $0x38] sm:$0xff]
    %v55 = vld [vmem:[%s6 + $0x40] sm:$0xff]
    %v56 = vld [vmem:[%s6 + $0x48] sm:$0xff]
    %v57 = vld [vmem:[%s6 + $0x50] sm:$0xff]
    %v58 = vld [vmem:[%s6 + $0x58] sm:$0xff]
    %v59 = vld [vmem:[%s6 + $0x60] sm:$0xff]
    %v60 = vld [vmem:[%s6 + $0x68] sm:$0xff]
    %v61 = vld [vmem:[%s6 + $0x70] sm:$0xff]
    %v62 = vld [vmem:[%s6 + $0x78] sm:$0xff]
    %v63 = vld [vmem:[%s7] sm:$0xff]
    %v64 = vld [vmem:[%s7 + $0x8] sm:$0xff]
    %v65 = vld [vmem:[%s7 + $0x10] sm:$0xff]
    %v66 = vld [vmem:[%s7 + $0x18] sm:$0xff]
    %v67 = vld [vmem:[%s7 + $0x20] sm:$0xff]
    %v68 = vld [vmem:[%s7 + $0x28] sm:$0xff]
    %v69 = vld [vmem:[%s7 + $0x30] sm:$0xff]
    %v70 = vld [vmem:[%s7 + $0x38] sm:$0xff]
    %v71 = vld [vmem:[%s7 + $0x40] sm:$0xff]
    %v72 = vld [vmem:[%s7 + $0x48] sm:$0xff]
    %v73 = vld [vmem:[%s7 + $0x50] sm:$0xff]
    %v74 = vld [vmem:[%s7 + $0x58] sm:$0xff]
    %v75 = vld [vmem:[%s7 + $0x60] sm:$0xff]
    %v76 = vld [vmem:[%s7 + $0x68] sm:$0xff]
    %v77 = vld [vmem:[%s7 + $0x70] sm:$0xff]
    %v78 = vld [vmem:[%s7 + $0x78] sm:$0xff]
    %v79 = vld [vmem:[%s1] sm:$0xf]
    %v80 = vld [vmem:[%s1 + $0x4] sm:$0xf]
    %v81 = vld [vmem:[%s1 + $0x8] sm:$0xf]
    %v82 = vld [vmem:[%s1 + $0xc] sm:$0xf]
    %v83 = vld [vmem:[%s1 + $0x10] sm:$0xf]
    %v84 = vld [vmem:[%s1 + $0x14] sm:$0xf]
    %v85 = vld [vmem:[%s1 + $0x18] sm:$0xf]
    %v86 = vld [vmem:[%s1 + $0x1c] sm:$0xf]
    %v87 = vld [vmem:[%s1 + $0x20] sm:$0xf]
    %v88 = vld [vmem:[%s1 + $0x24] sm:$0xf]
    %v89 = vld [vmem:[%s1 + $0x28] sm:$0xf]
    %v90 = vld [vmem:[%s1 + $0x2c] sm:$0xf]
    %v91 = vld [vmem:[%s1 + $0x30] sm:$0xf]
    %v92 = vld [vmem:[%s1 + $0x34] sm:$0xf]
    %v93 = vld [vmem:[%s1 + $0x38] sm:$0xf]
    %v94 = vld [vmem:[%s1 + $0x3c] sm:$0xf]
    %v95 = vld [vmem:[%s2] sm:$0xf]
    %v96 = vld [vmem:[%s2 + $0x4] sm:$0xf]
    %v113 = vunpack.c.l.b16 %v79
    %v114 = vunpack.c.l.b16 %v80
    %v115 = vunpack.c.l.b16 %v81
    %v116 = vunpack.c.l.b16 %v82
    %v117 = vunpack.c.l.b16 %v83
    %v118 = vunpack.c.l.b16 %v84
    %v119 = vunpack.c.l.b16 %v85
    %v120 = vunpack.c.l.b16 %v86
    %v121 = vunpack.c.l.b16 %v87
    %v122 = vunpack.c.l.b16 %v88
    %v123 = vunpack.c.l.b16 %v89
    %v124 = vunpack.c.l.b16 %v90
    %v125 = vunpack.c.l.b16 %v91
    %v126 = vunpack.c.l.b16 %v92
    %v127 = vunpack.c.l.b16 %v93
    %v128 = vunpack.c.l.b16 %v94
    %v129 = vpack.c.b16 %v114, %v113
    %v130 = vpack.c.b16 %v116, %v115
    %v131 = vpack.c.b16 %v118, %v117
    %v132 = vpack.c.b16 %v120, %v119
    %v133 = vpack.c.b16 %v122, %v121
    %v134 = vpack.c.b16 %v124, %v123
    %v135 = vpack.c.b16 %v126, %v125
    %v136 = vpack.c.b16 %v128, %v127
    %v139 = vunpack.c.l.b16 %v95
    %v140 = vunpack.c.l.b16 %v96
    %v141 = vpack.c.b16 %v140, %v139
    %vm143 = vcmask 130048
    %v145 = vsel %vm143, %v129, 0
    %v148 = vsel %vm143, %v130, 0
    %v151 = vsel %vm143, %v131, 0
    %v154 = vsel %vm143, %v132, 0
    %v157 = vsel %vm143, %v133, 0
    %v160 = vsel %vm143, %v134, 0
    %v163 = vsel %vm143, %v135, 0
    %v166 = vsel %vm143, %v136, 0
    %168 = vmatprep.subr.bf16.mxu0 0
    %169 = vmatpush1.bf16.msra.mxu0 0
    %170 = vmatprep.subr.bf16.mxu0 0
    %171 = vmatpush1.bf16.msra.mxu0 0
    %172 = vmatprep.subr.bf16.mxu0 0
    %173 = vmatpush1.bf16.msra.mxu0 0
    %174 = vmatprep.subr.bf16.mxu0 0
    %175 = vmatpush1.bf16.msra.mxu0 0
    %176 = vmatprep.subr.bf16.mxu0 0
    %177 = vmatpush1.bf16.msra.mxu0 0
    %178 = vmatprep.subr.bf16.mxu0 0
    %179 = vmatpush1.bf16.msra.mxu0 0
    %180 = vmatprep.subr.bf16.mxu0 0
    %181 = vmatpush1.bf16.msra.mxu0 0
    %182 = vmatprep.subr.bf16.mxu0 0
    %183 = vmatpush1.bf16.msra.mxu0 %v141
    %184 = vmatprep.subr.bf16.mxu0 0
    %185 = vmatpush2.bf16.msra.mxu0 0
    %186 = vmatprep.subr.bf16.mxu0 0
    %187 = vmatpush2.bf16.msra.mxu0 0
    %188 = vmatprep.subr.bf16.mxu0 0
    %189 = vmatpush2.bf16.msra.mxu0 0
    %190 = vmatprep.subr.bf16.mxu0 0
    %191 = vmatpush2.bf16.msra.mxu0 0
    %192 = vmatprep.subr.bf16.mxu0 0
    %193 = vmatpush2.bf16.msra.mxu0 0
    %194 = vmatprep.subr.bf16.mxu0 0
    %195 = vmatpush2.bf16.msra.mxu0 0
    %196 = vmatprep.subr.bf16.mxu0 0
    %197 = vmatpush2.bf16.msra.mxu0 0
    %198 = vmatprep.subr.bf16.mxu0 0
    %199 = vmatpush2.bf16.msra.mxu0 0
    %200 = vmatprep.mubr.bf16.mxu0 0
    %201 = vmatmul.mubr.bf16.gmra.mxu0 %v145
    %v202 = vpop.f32.mrf.mxu0
    %v203 = vadd.f32 0.0, %v202
    %v204 = vpop.f32.mrf.mxu0
    %v205 = vpop.f32.mrf.mxu0
    %v206 = vadd.f32 0.0, %v205
    %v207 = vpop.f32.mrf.mxu0
    %208 = vmatprep.mubr.bf16.mxu0 0
    %209 = vmatmul.mubr.bf16.gmra.mxu0 %v148
    %v210 = vpop.f32.mrf.mxu0
    %v211 = vadd.f32 0.0, %v210
    %v212 = vpop.f32.mrf.mxu0
    %v213 = vpop.f32.mrf.mxu0
    %v214 = vadd.f32 0.0, %v213
    %v215 = vpop.f32.mrf.mxu0
    %216 = vmatprep.mubr.bf16.mxu0 0
    %217 = vmatmul.mubr.bf16.gmra.mxu0 %v151
    %v218 = vpop.f32.mrf.mxu0
    %v219 = vadd.f32 0.0, %v218
    %v220 = vpop.f32.mrf.mxu0
    %v221 = vpop.f32.mrf.mxu0
    %v222 = vadd.f32 0.0, %v221
    %v223 = vpop.f32.mrf.mxu0
    %224 = vmatprep.mubr.bf16.mxu0 0
    %225 = vmatmul.mubr.bf16.gmra.mxu0 %v154
    %v226 = vpop.f32.mrf.mxu0
    %v227 = vadd.f32 0.0, %v226
    %v228 = vpop.f32.mrf.mxu0
    %v229 = vpop.f32.mrf.mxu0
    %v230 = vadd.f32 0.0, %v229
    %v231 = vpop.f32.mrf.mxu0
    %232 = vmatprep.mubr.bf16.mxu0 0
    %233 = vmatmul.mubr.bf16.gmra.mxu0 %v157
    %v234 = vpop.f32.mrf.mxu0
    %v235 = vadd.f32 0.0, %v234
    %v236 = vpop.f32.mrf.mxu0
    %v237 = vpop.f32.mrf.mxu0
    %v238 = vadd.f32 0.0, %v237
    %v239 = vpop.f32.mrf.mxu0
    %240 = vmatprep.mubr.bf16.mxu0 0
    %241 = vmatmul.mubr.bf16.gmra.mxu0 %v160
    %v242 = vpop.f32.mrf.mxu0
    %v243 = vadd.f32 0.0, %v242
    %v244 = vpop.f32.mrf.mxu0
    %v245 = vpop.f32.mrf.mxu0
    %v246 = vadd.f32 0.0, %v245
    %v247 = vpop.f32.mrf.mxu0
    %248 = vmatprep.mubr.bf16.mxu0 0
    %249 = vmatmul.mubr.bf16.gmra.mxu0 %v163
    %v250 = vpop.f32.mrf.mxu0
    %v251 = vadd.f32 0.0, %v250
    %v252 = vpop.f32.mrf.mxu0
    %v253 = vpop.f32.mrf.mxu0
    %v254 = vadd.f32 0.0, %v253
    %v255 = vpop.f32.mrf.mxu0
    %256 = vmatprep.mubr.bf16.mxu0 0
    %257 = vmatmul.mubr.bf16.gmra.mxu0 %v166
    %v258 = vpop.f32.mrf.mxu0
    %v259 = vadd.f32 0.0, %v258
    %v260 = vpop.f32.mrf.mxu0
    %v261 = vpop.f32.mrf.mxu0
    %v262 = vadd.f32 0.0, %v261
    %v263 = vpop.f32.mrf.mxu0
    %264 = vdwg.mxu0
    %266 = vset.pattern.permute.xlu0 0
    %267 = vperm.xlu0 %266, %v63
    %v268 = vpop.permute.xlu0 %267
    %271 = vset.pattern.permute.xlu0 0
    %272 = vperm.xlu0 %271, %v64
    %v273 = vpop.permute.xlu0 %272
    %276 = vset.pattern.permute.xlu0 0
    %277 = vperm.xlu0 %276, %v65
    %v278 = vpop.permute.xlu0 %277
    %281 = vset.pattern.permute.xlu0 0
    %282 = vperm.xlu0 %281, %v66
    %v283 = vpop.permute.xlu0 %282
    %286 = vset.pattern.permute.xlu0 0
    %287 = vperm.xlu0 %286, %v67
    %v288 = vpop.permute.xlu0 %287
    %291 = vset.pattern.permute.xlu0 0
    %292 = vperm.xlu0 %291, %v68
    %v293 = vpop.permute.xlu0 %292
    %296 = vset.pattern.permute.xlu0 0
    %297 = vperm.xlu0 %296, %v69
    %v298 = vpop.permute.xlu0 %297
    %301 = vset.pattern.permute.xlu0 0
    %302 = vperm.xlu0 %301, %v70
    %v303 = vpop.permute.xlu0 %302
    %306 = vset.pattern.permute.xlu0 0
    %307 = vperm.xlu0 %306, %v71
    %v308 = vpop.permute.xlu0 %307
    %311 = vset.pattern.permute.xlu0 0
    %312 = vperm.xlu0 %311, %v72
    %v313 = vpop.permute.xlu0 %312
    %316 = vset.pattern.permute.xlu0 0
    %317 = vperm.xlu0 %316, %v73
    %v318 = vpop.permute.xlu0 %317
    %321 = vset.pattern.permute.xlu0 0
    %322 = vperm.xlu0 %321, %v74
    %v323 = vpop.permute.xlu0 %322
    %326 = vset.pattern.permute.xlu0 0
    %327 = vperm.xlu0 %326, %v75
    %v328 = vpop.permute.xlu0 %327
    %331 = vset.pattern.permute.xlu0 0
    %332 = vperm.xlu0 %331, %v76
    %v333 = vpop.permute.xlu0 %332
    %336 = vset.pattern.permute.xlu0 0
    %337 = vperm.xlu0 %336, %v77
    %v338 = vpop.permute.xlu0 %337
    %341 = vset.pattern.permute.xlu0 0
    %342 = vperm.xlu0 %341, %v78
    %v343 = vpop.permute.xlu0 %342
    %v345 = vmul.f32 %v203, %v268
    %v346 = vmul.f32 %v206, %v273
    %v347 = vmul.f32 %v211, %v278
    %v348 = vmul.f32 %v214, %v283
    %v349 = vmul.f32 %v219, %v288
    %v350 = vmul.f32 %v222, %v293
    %v351 = vmul.f32 %v227, %v298
    %v352 = vmul.f32 %v230, %v303
    %v353 = vmul.f32 %v235, %v308
    %v354 = vmul.f32 %v238, %v313
    %v355 = vmul.f32 %v243, %v318
    %v356 = vmul.f32 %v246, %v323
    %v357 = vmul.f32 %v251, %v328
    %v358 = vmul.f32 %v254, %v333
    %v359 = vmul.f32 %v259, %v338
    %v360 = vmul.f32 %v262, %v343
    %v361 = vpack.c.bf16 %v346, %v345
    %v362 = vpack.c.bf16 %v348, %v347
    %v363 = vpack.c.bf16 %v350, %v349
    %v364 = vpack.c.bf16 %v352, %v351
    %v365 = vpack.c.bf16 %v354, %v353
    %v366 = vpack.c.bf16 %v356, %v355
    %v367 = vpack.c.bf16 %v358, %v357
    %v368 = vpack.c.bf16 %v360, %v359
    %v385 = vunpack.c.l.b16 %v31
    %v386 = vunpack.c.l.b16 %v32
    %v387 = vunpack.c.l.b16 %v33
    %v388 = vunpack.c.l.b16 %v34
    %v389 = vunpack.c.l.b16 %v35
    %v390 = vunpack.c.l.b16 %v36
    %v391 = vunpack.c.l.b16 %v37
    %v392 = vunpack.c.l.b16 %v38
    %v393 = vunpack.c.l.b16 %v39
    %v394 = vunpack.c.l.b16 %v40
    %v395 = vunpack.c.l.b16 %v41
    %v396 = vunpack.c.l.b16 %v42
    %v397 = vunpack.c.l.b16 %v43
    %v398 = vunpack.c.l.b16 %v44
    %v399 = vunpack.c.l.b16 %v45
    %v400 = vunpack.c.l.b16 %v46
    %v401 = vpack.c.b16 %v386, %v385
    %v402 = vpack.c.b16 %v388, %v387
    %v403 = vpack.c.b16 %v390, %v389
    %v404 = vpack.c.b16 %v392, %v391
    %v405 = vpack.c.b16 %v394, %v393
    %v406 = vpack.c.b16 %v396, %v395
    %v407 = vpack.c.b16 %v398, %v397
    %v408 = vpack.c.b16 %v400, %v399
    %417 = vmatprep.subr.bf16.mxu0 0
    %418 = vmatpush1.bf16.msra.mxu0 %v368
    %419 = vmatprep.subr.bf16.mxu0 0
    %420 = vmatpush1.bf16.msra.mxu0 %v367
    %421 = vmatprep.subr.bf16.mxu0 0
    %422 = vmatpush1.bf16.msra.mxu0 %v366
    %423 = vmatprep.subr.bf16.mxu0 0
    %424 = vmatpush1.bf16.msra.mxu0 %v365
    %425 = vmatprep.subr.bf16.mxu0 0
    %426 = vmatpush1.bf16.msra.mxu0 %v364
    %427 = vmatprep.subr.bf16.mxu0 0
    %428 = vmatpush1.bf16.msra.mxu0 %v363
    %429 = vmatprep.subr.bf16.mxu0 0
    %430 = vmatpush1.bf16.msra.mxu0 %v362
    %431 = vmatprep.subr.bf16.mxu0 0
    %432 = vmatpush1.bf16.msra.mxu0 %v361
    %433 = vmatprep.subr.bf16.mxu0 0
    %434 = vmatpush2.bf16.msra.mxu0 0
    %435 = vmatprep.subr.bf16.mxu0 0
    %436 = vmatpush2.bf16.msra.mxu0 0
    %437 = vmatprep.subr.bf16.mxu0 0
    %438 = vmatpush2.bf16.msra.mxu0 0
    %439 = vmatprep.subr.bf16.mxu0 0
    %440 = vmatpush2.bf16.msra.mxu0 0
    %441 = vmatprep.subr.bf16.mxu0 0
    %442 = vmatpush2.bf16.msra.mxu0 0
    %443 = vmatprep.subr.bf16.mxu0 0
    %444 = vmatpush2.bf16.msra.mxu0 0
    %445 = vmatprep.subr.bf16.mxu0 0
    %446 = vmatpush2.bf16.msra.mxu0 0
    %447 = vmatprep.subr.bf16.mxu0 0
    %448 = vmatpush2.bf16.msra.mxu0 0
    %449 = vmatprep.mubr.bf16.mxu0 0
    %450 = vmatmul.mubr.bf16.gmra.mxu0 %v401
    %v451 = vpop.f32.mrf.mxu0
    %v452 = vadd.f32 0.0, %v451
    %v453 = vpop.f32.mrf.mxu0
    %v454 = vpop.f32.mrf.mxu0
    %v455 = vadd.f32 0.0, %v454
    %v456 = vpop.f32.mrf.mxu0
    %457 = vmatprep.mubr.bf16.mxu0 0
    %458 = vmatmul.mubr.bf16.gmra.mxu0 %v402
    %v459 = vpop.f32.mrf.mxu0
    %v460 = vadd.f32 0.0, %v459
    %v461 = vpop.f32.mrf.mxu0
    %v462 = vpop.f32.mrf.mxu0
    %v463 = vadd.f32 0.0, %v462
    %v464 = vpop.f32.mrf.mxu0
    %465 = vmatprep.mubr.bf16.mxu0 0
    %466 = vmatmul.mubr.bf16.gmra.mxu0 %v403
    %v467 = vpop.f32.mrf.mxu0
    %v468 = vadd.f32 0.0, %v467
    %v469 = vpop.f32.mrf.mxu0
    %v470 = vpop.f32.mrf.mxu0
    %v471 = vadd.f32 0.0, %v470
    %v472 = vpop.f32.mrf.mxu0
    %473 = vmatprep.mubr.bf16.mxu0 0
    %474 = vmatmul.mubr.bf16.gmra.mxu0 %v404
    %v475 = vpop.f32.mrf.mxu0
    %v476 = vadd.f32 0.0, %v475
    %v477 = vpop.f32.mrf.mxu0
    %v478 = vpop.f32.mrf.mxu0
    %v479 = vadd.f32 0.0, %v478
    %v480 = vpop.f32.mrf.mxu0
    %481 = vmatprep.mubr.bf16.mxu0 0
    %482 = vmatmul.mubr.bf16.gmra.mxu0 %v405
    %v483 = vpop.f32.mrf.mxu0
    %v484 = vadd.f32 0.0, %v483
    %v485 = vpop.f32.mrf.mxu0
    %v486 = vpop.f32.mrf.mxu0
    %v487 = vadd.f32 0.0, %v486
    %v488 = vpop.f32.mrf.mxu0
    %489 = vmatprep.mubr.bf16.mxu0 0
    %490 = vmatmul.mubr.bf16.gmra.mxu0 %v406
    %v491 = vpop.f32.mrf.mxu0
    %v492 = vadd.f32 0.0, %v491
    %v493 = vpop.f32.mrf.mxu0
    %v494 = vpop.f32.mrf.mxu0
    %v495 = vadd.f32 0.0, %v494
    %v496 = vpop.f32.mrf.mxu0
    %497 = vmatprep.mubr.bf16.mxu0 0
    %498 = vmatmul.mubr.bf16.gmra.mxu0 %v407
    %v499 = vpop.f32.mrf.mxu0
    %v500 = vadd.f32 0.0, %v499
    %v501 = vpop.f32.mrf.mxu0
    %v502 = vpop.f32.mrf.mxu0
    %v503 = vadd.f32 0.0, %v502
    %v504 = vpop.f32.mrf.mxu0
    %505 = vmatprep.mubr.bf16.mxu0 0
    %506 = vmatmul.mubr.bf16.gmra.mxu0 %v408
    %v507 = vpop.f32.mrf.mxu0
    %v508 = vadd.f32 0.0, %v507
    %v509 = vpop.f32.mrf.mxu0
    %v510 = vpop.f32.mrf.mxu0
    %v511 = vadd.f32 0.0, %v510
    %v512 = vpop.f32.mrf.mxu0
    %513 = vdwg.mxu0
    %515 = vset.pattern.permute.xlu0 0
    %516 = vperm.xlu0 %515, %v47
    %v517 = vpop.permute.xlu0 %516
    %520 = vset.pattern.permute.xlu0 0
    %521 = vperm.xlu0 %520, %v48
    %v522 = vpop.permute.xlu0 %521
    %525 = vset.pattern.permute.xlu0 0
    %526 = vperm.xlu0 %525, %v49
    %v527 = vpop.permute.xlu0 %526
    %530 = vset.pattern.permute.xlu0 0
    %531 = vperm.xlu0 %530, %v50
    %v532 = vpop.permute.xlu0 %531
    %535 = vset.pattern.permute.xlu0 0
    %536 = vperm.xlu0 %535, %v51
    %v537 = vpop.permute.xlu0 %536
    %540 = vset.pattern.permute.xlu0 0
    %541 = vperm.xlu0 %540, %v52
    %v542 = vpop.permute.xlu0 %541
    %545 = vset.pattern.permute.xlu0 0
    %546 = vperm.xlu0 %545, %v53
    %v547 = vpop.permute.xlu0 %546
    %550 = vset.pattern.permute.xlu0 0
    %551 = vperm.xlu0 %550, %v54
    %v552 = vpop.permute.xlu0 %551
    %555 = vset.pattern.permute.xlu0 0
    %556 = vperm.xlu0 %555, %v55
    %v557 = vpop.permute.xlu0 %556
    %560 = vset.pattern.permute.xlu0 0
    %561 = vperm.xlu0 %560, %v56
    %v562 = vpop.permute.xlu0 %561
    %565 = vset.pattern.permute.xlu0 0
    %566 = vperm.xlu0 %565, %v57
    %v567 = vpop.permute.xlu0 %566
    %570 = vset.pattern.permute.xlu0 0
    %571 = vperm.xlu0 %570, %v58
    %v572 = vpop.permute.xlu0 %571
    %575 = vset.pattern.permute.xlu0 0
    %576 = vperm.xlu0 %575, %v59
    %v577 = vpop.permute.xlu0 %576
    %580 = vset.pattern.permute.xlu0 0
    %581 = vperm.xlu0 %580, %v60
    %v582 = vpop.permute.xlu0 %581
    %585 = vset.pattern.permute.xlu0 0
    %586 = vperm.xlu0 %585, %v61
    %v587 = vpop.permute.xlu0 %586
    %590 = vset.pattern.permute.xlu0 0
    %591 = vperm.xlu0 %590, %v62
    %v592 = vpop.permute.xlu0 %591
    %v594 = vmul.f32 %v452, %v517
    %v595 = vmul.f32 %v455, %v522
    %v596 = vmul.f32 %v460, %v527
    %v597 = vmul.f32 %v463, %v532
    %v598 = vmul.f32 %v468, %v537
    %v599 = vmul.f32 %v471, %v542
    %v600 = vmul.f32 %v476, %v547
    %v601 = vmul.f32 %v479, %v552
    %v602 = vmul.f32 %v484, %v557
    %v603 = vmul.f32 %v487, %v562
    %v604 = vmul.f32 %v492, %v567
    %v605 = vmul.f32 %v495, %v572
    %v606 = vmul.f32 %v500, %v577
    %v607 = vmul.f32 %v503, %v582
    %v608 = vmul.f32 %v508, %v587
    %v609 = vmul.f32 %v511, %v592
    %v610 = vld [vmem:[%s3] sm:$0x1]
    %v612 = vlaneseq
    %v613 = vshrl.u32 %v612, 7
    %v614 = vsub.s32 0, %v613
    %v615 = vrot.slane %v610, %v614
    %v617 = vadd.f32 %v594, %v615
    %v618 = vadd.f32 %v595, %v615
    %v619 = vadd.f32 %v596, %v615
    %v620 = vadd.f32 %v597, %v615
    %v621 = vadd.f32 %v598, %v615
    %v622 = vadd.f32 %v599, %v615
    %v623 = vadd.f32 %v600, %v615
    %v624 = vadd.f32 %v601, %v615
    %v625 = vadd.f32 %v602, %v615
    %v626 = vadd.f32 %v603, %v615
    %v627 = vadd.f32 %v604, %v615
    %v628 = vadd.f32 %v605, %v615
    %v629 = vadd.f32 %v606, %v615
    %v630 = vadd.f32 %v607, %v615
    %v631 = vadd.f32 %v608, %v615
    %v632 = vadd.f32 %v609, %v615
    %v633 = vmax.f32 %v617, 0.0
    %v634 = vmax.f32 %v618, 0.0
    %v635 = vmax.f32 %v619, 0.0
    %v636 = vmax.f32 %v620, 0.0
    %v637 = vmax.f32 %v621, 0.0
    %v638 = vmax.f32 %v622, 0.0
    %v639 = vmax.f32 %v623, 0.0
    %v640 = vmax.f32 %v624, 0.0
    %v641 = vmax.f32 %v625, 0.0
    %v642 = vmax.f32 %v626, 0.0
    %v643 = vmax.f32 %v627, 0.0
    %v644 = vmax.f32 %v628, 0.0
    %v645 = vmax.f32 %v629, 0.0
    %v646 = vmax.f32 %v630, 0.0
    %v647 = vmax.f32 %v631, 0.0
    %v648 = vmax.f32 %v632, 0.0
    %v649 = vpack.c.bf16 %v634, %v633
    %v650 = vpack.c.bf16 %v636, %v635
    %v651 = vpack.c.bf16 %v638, %v637
    %v652 = vpack.c.bf16 %v640, %v639
    %v653 = vpack.c.bf16 %v642, %v641
    %v654 = vpack.c.bf16 %v644, %v643
    %v655 = vpack.c.bf16 %v646, %v645
    %v656 = vpack.c.bf16 %v648, %v647
    %v657 = vld [vmem:[%s4] sm:$0xf]
    %v658 = vld [vmem:[%s4 + $0x4] sm:$0xf]
    %v659 = vld [vmem:[%s4 + $0x8] sm:$0xf]
    %v660 = vld [vmem:[%s4 + $0xc] sm:$0xf]
    %v661 = vld [vmem:[%s4 + $0x10] sm:$0xf]
    %v662 = vld [vmem:[%s4 + $0x14] sm:$0xf]
    %v663 = vld [vmem:[%s4 + $0x18] sm:$0xf]
    %v664 = vld [vmem:[%s4 + $0x1c] sm:$0xf]
    %v665 = vld [vmem:[%s4 + $0x20] sm:$0xf]
    %v666 = vld [vmem:[%s4 + $0x24] sm:$0xf]
    %v667 = vld [vmem:[%s4 + $0x28] sm:$0xf]
    %v668 = vld [vmem:[%s4 + $0x2c] sm:$0xf]
    %v669 = vld [vmem:[%s4 + $0x30] sm:$0xf]
    %v670 = vld [vmem:[%s4 + $0x34] sm:$0xf]
    %v671 = vld [vmem:[%s4 + $0x38] sm:$0xf]
    %v672 = vld [vmem:[%s4 + $0x3c] sm:$0xf]
    %v689 = vunpack.c.l.b16 %v657
    %v690 = vunpack.c.l.b16 %v658
    %v691 = vunpack.c.l.b16 %v659
    %v692 = vunpack.c.l.b16 %v660
    %v693 = vunpack.c.l.b16 %v661
    %v694 = vunpack.c.l.b16 %v662
    %v695 = vunpack.c.l.b16 %v663
    %v696 = vunpack.c.l.b16 %v664
    %v697 = vunpack.c.l.b16 %v665
    %v698 = vunpack.c.l.b16 %v666
    %v699 = vunpack.c.l.b16 %v667
    %v700 = vunpack.c.l.b16 %v668
    %v701 = vunpack.c.l.b16 %v669
    %v702 = vunpack.c.l.b16 %v670
    %v703 = vunpack.c.l.b16 %v671
    %v704 = vunpack.c.l.b16 %v672
    %v705 = vpack.c.b16 %v690, %v689
    %v706 = vpack.c.b16 %v692, %v691
    %v707 = vpack.c.b16 %v694, %v693
    %v708 = vpack.c.b16 %v696, %v695
    %v709 = vpack.c.b16 %v698, %v697
    %v710 = vpack.c.b16 %v700, %v699
    %v711 = vpack.c.b16 %v702, %v701
    %v712 = vpack.c.b16 %v704, %v703
    %721 = vmatprep.subr.bf16.mxu0 0
    %722 = vmatpush1.bf16.msra.mxu0 %v712
    %723 = vmatprep.subr.bf16.mxu0 0
    %724 = vmatpush1.bf16.msra.mxu0 %v711
    %725 = vmatprep.subr.bf16.mxu0 0
    %726 = vmatpush1.bf16.msra.mxu0 %v710
    %727 = vmatprep.subr.bf16.mxu0 0
    %728 = vmatpush1.bf16.msra.mxu0 %v709
    %729 = vmatprep.subr.bf16.mxu0 0
    %730 = vmatpush1.bf16.msra.mxu0 %v708
    %731 = vmatprep.subr.bf16.mxu0 0
    %732 = vmatpush1.bf16.msra.mxu0 %v707
    %733 = vmatprep.subr.bf16.mxu0 0
    %734 = vmatpush1.bf16.msra.mxu0 %v706
    %735 = vmatprep.subr.bf16.mxu0 0
    %736 = vmatpush1.bf16.msra.mxu0 %v705
    %737 = vmatprep.subr.bf16.mxu0 0
    %738 = vmatpush2.bf16.msra.mxu0 0
    %739 = vmatprep.subr.bf16.mxu0 0
    %740 = vmatpush2.bf16.msra.mxu0 0
    %741 = vmatprep.subr.bf16.mxu0 0
    %742 = vmatpush2.bf16.msra.mxu0 0
    %743 = vmatprep.subr.bf16.mxu0 0
    %744 = vmatpush2.bf16.msra.mxu0 0
    %745 = vmatprep.subr.bf16.mxu0 0
    %746 = vmatpush2.bf16.msra.mxu0 0
    %747 = vmatprep.subr.bf16.mxu0 0
    %748 = vmatpush2.bf16.msra.mxu0 0
    %749 = vmatprep.subr.bf16.mxu0 0
    %750 = vmatpush2.bf16.msra.mxu0 0
    %751 = vmatprep.subr.bf16.mxu0 0
    %752 = vmatpush2.bf16.msra.mxu0 0
    %753 = vmatprep.mubr.bf16.mxu0 0
    %754 = vmatmul.mubr.bf16.gmra.mxu0 %v649
    %v755 = vpop.f32.mrf.mxu0
    %v756 = vadd.f32 0.0, %v755
    %v757 = vpop.f32.mrf.mxu0
    %v758 = vpop.f32.mrf.mxu0
    %v759 = vadd.f32 0.0, %v758
    %v760 = vpop.f32.mrf.mxu0
    %761 = vmatprep.mubr.bf16.mxu0 0
    %762 = vmatmul.mubr.bf16.gmra.mxu0 %v650
    %v763 = vpop.f32.mrf.mxu0
    %v764 = vadd.f32 0.0, %v763
    %v765 = vpop.f32.mrf.mxu0
    %v766 = vpop.f32.mrf.mxu0
    %v767 = vadd.f32 0.0, %v766
    %v768 = vpop.f32.mrf.mxu0
    %769 = vmatprep.mubr.bf16.mxu0 0
    %770 = vmatmul.mubr.bf16.gmra.mxu0 %v651
    %v771 = vpop.f32.mrf.mxu0
    %v772 = vadd.f32 0.0, %v771
    %v773 = vpop.f32.mrf.mxu0
    %v774 = vpop.f32.mrf.mxu0
    %v775 = vadd.f32 0.0, %v774
    %v776 = vpop.f32.mrf.mxu0
    %777 = vmatprep.mubr.bf16.mxu0 0
    %778 = vmatmul.mubr.bf16.gmra.mxu0 %v652
    %v779 = vpop.f32.mrf.mxu0
    %v780 = vadd.f32 0.0, %v779
    %v781 = vpop.f32.mrf.mxu0
    %v782 = vpop.f32.mrf.mxu0
    %v783 = vadd.f32 0.0, %v782
    %v784 = vpop.f32.mrf.mxu0
    %785 = vmatprep.mubr.bf16.mxu0 0
    %786 = vmatmul.mubr.bf16.gmra.mxu0 %v653
    %v787 = vpop.f32.mrf.mxu0
    %v788 = vadd.f32 0.0, %v787
    %v789 = vpop.f32.mrf.mxu0
    %v790 = vpop.f32.mrf.mxu0
    %v791 = vadd.f32 0.0, %v790
    %v792 = vpop.f32.mrf.mxu0
    %793 = vmatprep.mubr.bf16.mxu0 0
    %794 = vmatmul.mubr.bf16.gmra.mxu0 %v654
    %v795 = vpop.f32.mrf.mxu0
    %v796 = vadd.f32 0.0, %v795
    %v797 = vpop.f32.mrf.mxu0
    %v798 = vpop.f32.mrf.mxu0
    %v799 = vadd.f32 0.0, %v798
    %v800 = vpop.f32.mrf.mxu0
    %801 = vmatprep.mubr.bf16.mxu0 0
    %802 = vmatmul.mubr.bf16.gmra.mxu0 %v655
    %v803 = vpop.f32.mrf.mxu0
    %v804 = vadd.f32 0.0, %v803
    %v805 = vpop.f32.mrf.mxu0
    %v806 = vpop.f32.mrf.mxu0
    %v807 = vadd.f32 0.0, %v806
    %v808 = vpop.f32.mrf.mxu0
    %809 = vmatprep.mubr.bf16.mxu0 0
    %810 = vmatmul.mubr.bf16.gmra.mxu0 %v656
    %v811 = vpop.f32.mrf.mxu0
    %v812 = vadd.f32 0.0, %v811
    %v813 = vpop.f32.mrf.mxu0
    %v814 = vpop.f32.mrf.mxu0
    %v815 = vadd.f32 0.0, %v814
    %v816 = vpop.f32.mrf.mxu0
    %817 = vdwg.mxu0
    %v818 = vmul.f32 %v756, %v268
    %v819 = vmul.f32 %v759, %v273
    %v820 = vmul.f32 %v764, %v278
    %v821 = vmul.f32 %v767, %v283
    %v822 = vmul.f32 %v772, %v288
    %v823 = vmul.f32 %v775, %v293
    %v824 = vmul.f32 %v780, %v298
    %v825 = vmul.f32 %v783, %v303
    %v826 = vmul.f32 %v788, %v308
    %v827 = vmul.f32 %v791, %v313
    %v828 = vmul.f32 %v796, %v318
    %v829 = vmul.f32 %v799, %v323
    %v830 = vmul.f32 %v804, %v328
    %v831 = vmul.f32 %v807, %v333
    %v832 = vmul.f32 %v812, %v338
    %v833 = vmul.f32 %v815, %v343
    %v834 = vpack.c.bf16 %v819, %v818
    %v835 = vpack.c.bf16 %v821, %v820
    %v836 = vpack.c.bf16 %v823, %v822
    %v837 = vpack.c.bf16 %v825, %v824
    %v838 = vpack.c.bf16 %v827, %v826
    %v839 = vpack.c.bf16 %v829, %v828
    %v840 = vpack.c.bf16 %v831, %v830
    %v841 = vpack.c.bf16 %v833, %v832
    %842 = vmatprep.subr.bf16.mxu0 0
    %843 = vmatpush1.bf16.msra.mxu0 %v841
    %844 = vmatprep.subr.bf16.mxu0 0
    %845 = vmatpush1.bf16.msra.mxu0 %v840
    %846 = vmatprep.subr.bf16.mxu0 0
    %847 = vmatpush1.bf16.msra.mxu0 %v839
    %848 = vmatprep.subr.bf16.mxu0 0
    %849 = vmatpush1.bf16.msra.mxu0 %v838
    %850 = vmatprep.subr.bf16.mxu0 0
    %851 = vmatpush1.bf16.msra.mxu0 %v837
    %852 = vmatprep.subr.bf16.mxu0 0
    %853 = vmatpush1.bf16.msra.mxu0 %v836
    %854 = vmatprep.subr.bf16.mxu0 0
    %855 = vmatpush1.bf16.msra.mxu0 %v835
    %856 = vmatprep.subr.bf16.mxu0 0
    %857 = vmatpush1.bf16.msra.mxu0 %v834
    %858 = vmatprep.subr.bf16.mxu0 0
    %859 = vmatpush2.bf16.msra.mxu0 0
    %860 = vmatprep.subr.bf16.mxu0 0
    %861 = vmatpush2.bf16.msra.mxu0 0
    %862 = vmatprep.subr.bf16.mxu0 0
    %863 = vmatpush2.bf16.msra.mxu0 0
    %864 = vmatprep.subr.bf16.mxu0 0
    %865 = vmatpush2.bf16.msra.mxu0 0
    %866 = vmatprep.subr.bf16.mxu0 0
    %867 = vmatpush2.bf16.msra.mxu0 0
    %868 = vmatprep.subr.bf16.mxu0 0
    %869 = vmatpush2.bf16.msra.mxu0 0
    %870 = vmatprep.subr.bf16.mxu0 0
    %871 = vmatpush2.bf16.msra.mxu0 0
    %872 = vmatprep.subr.bf16.mxu0 0
    %873 = vmatpush2.bf16.msra.mxu0 0
    %874 = vmatprep.mubr.bf16.mxu0 0
    %875 = vmatmul.mubr.bf16.gmra.mxu0 %v401
    %v876 = vpop.f32.mrf.mxu0
    %v877 = vadd.f32 0.0, %v876
    %v878 = vpop.f32.mrf.mxu0
    %v879 = vpop.f32.mrf.mxu0
    %v880 = vadd.f32 0.0, %v879
    %v881 = vpop.f32.mrf.mxu0
    %882 = vmatprep.mubr.bf16.mxu0 0
    %883 = vmatmul.mubr.bf16.gmra.mxu0 %v402
    %v884 = vpop.f32.mrf.mxu0
    %v885 = vadd.f32 0.0, %v884
    %v886 = vpop.f32.mrf.mxu0
    %v887 = vpop.f32.mrf.mxu0
    %v888 = vadd.f32 0.0, %v887
    %v889 = vpop.f32.mrf.mxu0
    %890 = vmatprep.mubr.bf16.mxu0 0
    %891 = vmatmul.mubr.bf16.gmra.mxu0 %v403
    %v892 = vpop.f32.mrf.mxu0
    %v893 = vadd.f32 0.0, %v892
    %v894 = vpop.f32.mrf.mxu0
    %v895 = vpop.f32.mrf.mxu0
    %v896 = vadd.f32 0.0, %v895
    %v897 = vpop.f32.mrf.mxu0
    %898 = vmatprep.mubr.bf16.mxu0 0
    %899 = vmatmul.mubr.bf16.gmra.mxu0 %v404
    %v900 = vpop.f32.mrf.mxu0
    %v901 = vadd.f32 0.0, %v900
    %v902 = vpop.f32.mrf.mxu0
    %v903 = vpop.f32.mrf.mxu0
    %v904 = vadd.f32 0.0, %v903
    %v905 = vpop.f32.mrf.mxu0
    %906 = vmatprep.mubr.bf16.mxu0 0
    %907 = vmatmul.mubr.bf16.gmra.mxu0 %v405
    %v908 = vpop.f32.mrf.mxu0
    %v909 = vadd.f32 0.0, %v908
    %v910 = vpop.f32.mrf.mxu0
    %v911 = vpop.f32.mrf.mxu0
    %v912 = vadd.f32 0.0, %v911
    %v913 = vpop.f32.mrf.mxu0
    %914 = vmatprep.mubr.bf16.mxu0 0
    %915 = vmatmul.mubr.bf16.gmra.mxu0 %v406
    %v916 = vpop.f32.mrf.mxu0
    %v917 = vadd.f32 0.0, %v916
    %v918 = vpop.f32.mrf.mxu0
    %v919 = vpop.f32.mrf.mxu0
    %v920 = vadd.f32 0.0, %v919
    %v921 = vpop.f32.mrf.mxu0
    %922 = vmatprep.mubr.bf16.mxu0 0
    %923 = vmatmul.mubr.bf16.gmra.mxu0 %v407
    %v924 = vpop.f32.mrf.mxu0
    %v925 = vadd.f32 0.0, %v924
    %v926 = vpop.f32.mrf.mxu0
    %v927 = vpop.f32.mrf.mxu0
    %v928 = vadd.f32 0.0, %v927
    %v929 = vpop.f32.mrf.mxu0
    %930 = vmatprep.mubr.bf16.mxu0 0
    %931 = vmatmul.mubr.bf16.gmra.mxu0 %v408
    %v932 = vpop.f32.mrf.mxu0
    %v933 = vadd.f32 0.0, %v932
    %v934 = vpop.f32.mrf.mxu0
    %v935 = vpop.f32.mrf.mxu0
    %v936 = vadd.f32 0.0, %v935
    %v937 = vpop.f32.mrf.mxu0
    %938 = vdwg.mxu0
    %v939 = vmul.f32 %v877, %v517
    %v940 = vmul.f32 %v880, %v522
    %v941 = vmul.f32 %v885, %v527
    %v942 = vmul.f32 %v888, %v532
    %v943 = vmul.f32 %v893, %v537
    %v944 = vmul.f32 %v896, %v542
    %v945 = vmul.f32 %v901, %v547
    %v946 = vmul.f32 %v904, %v552
    %v947 = vmul.f32 %v909, %v557
    %v948 = vmul.f32 %v912, %v562
    %v949 = vmul.f32 %v917, %v567
    %v950 = vmul.f32 %v920, %v572
    %v951 = vmul.f32 %v925, %v577
    %v952 = vmul.f32 %v928, %v582
    %v953 = vmul.f32 %v933, %v587
    %v954 = vmul.f32 %v936, %v592
    %v955 = vld [vmem:[%s5] sm:$0x1]
    %v957 = vlaneseq
    %v958 = vshrl.u32 %v957, 7
    %v959 = vsub.s32 0, %v958
    %v960 = vrot.slane %v955, %v959
    %v962 = vadd.f32 %v939, %v960
    %v963 = vadd.f32 %v940, %v960
    %v964 = vadd.f32 %v941, %v960
    %v965 = vadd.f32 %v942, %v960
    %v966 = vadd.f32 %v943, %v960
    %v967 = vadd.f32 %v944, %v960
    %v968 = vadd.f32 %v945, %v960
    %v969 = vadd.f32 %v946, %v960
    %v970 = vadd.f32 %v947, %v960
    %v971 = vadd.f32 %v948, %v960
    %v972 = vadd.f32 %v949, %v960
    %v973 = vadd.f32 %v950, %v960
    %v974 = vadd.f32 %v951, %v960
    %v975 = vadd.f32 %v952, %v960
    %v976 = vadd.f32 %v953, %v960
    %v977 = vadd.f32 %v954, %v960
    %978 = vst [vmem:[#allocation2] sm:$0xff] %v962
    %979 = vst [vmem:[#allocation2 + $0x8] sm:$0xff] %v963
    %980 = vst [vmem:[#allocation2 + $0x10] sm:$0xff] %v964
    %981 = vst [vmem:[#allocation2 + $0x18] sm:$0xff] %v965
    %982 = vst [vmem:[#allocation2 + $0x20] sm:$0xff] %v966
    %983 = vst [vmem:[#allocation2 + $0x28] sm:$0xff] %v967
    %984 = vst [vmem:[#allocation2 + $0x30] sm:$0xff] %v968
    %985 = vst [vmem:[#allocation2 + $0x38] sm:$0xff] %v969
    %986 = vst [vmem:[#allocation2 + $0x40] sm:$0xff] %v970
    %987 = vst [vmem:[#allocation2 + $0x48] sm:$0xff] %v971
    %988 = vst [vmem:[#allocation2 + $0x50] sm:$0xff] %v972
    %989 = vst [vmem:[#allocation2 + $0x58] sm:$0xff] %v973
    %990 = vst [vmem:[#allocation2 + $0x60] sm:$0xff] %v974
    %991 = vst [vmem:[#allocation2 + $0x68] sm:$0xff] %v975
    %992 = vst [vmem:[#allocation2 + $0x70] sm:$0xff] %v976
    %993 = vst [vmem:[#allocation2 + $0x78] sm:$0xff] %v977
    // Predicated region
    $region34: #{_gcn_forward.1} parent=1 // pred_check
      _
    $region35: #{_gcn_forward.1} parent=1 // pred_check_branch
      %995 = sbr.rel (0) target = $region37
    $region36: #{_gcn_forward.1} parent=1 // pred_region
      %s997 = ssub.s32 2048, 2048
      %998 = vsyncadd [#allocation3], %s997
      %s999 = sshll.u32 [#allocation2], 4
      %s1000 = int_to_ptr.vmem [resolvable:$true] %s999
      %1005 = dma.vmem_to_hbm [thread:$0]  %s1000, 2048, %s8, [#allocation3], 128, 128, 8
    $region37: #{_gcn_forward.1} parent=1 // pred_fallthru
      _
    // Predicated region
    $region38: #{_gcn_forward.1} parent=1 // pred_check
      _
    $region39: #{_gcn_forward.1} parent=1 // pred_check_branch
      %1007 = sbr.rel (0) target = $region41
    $region40: #{_gcn_forward.1} parent=1 // pred_region
      %1008 = dma.done [#allocation3], 2048
    $region41: #{_gcn_forward.1} parent=1 // pred_fallthru
      _
    %1009 = vsyncpa [#allocation3], 1

</llo_original>
